<compile_context>
chip_gen: v5e
topology: v5e:2x2
jax: 0.10.0
libtpu: 0.0.40
codegen_flags: <defaults>
</compile_context>

<pallas_src>
import functools

import jax
import jax.numpy as jnp
from jax.experimental import pallas as pl
from jax.experimental.pallas import tpu as pltpu


def _cdiv(a, b):
    return -(-a // b)


def _pick_tile_rows(rows, cols, itemsize, target_bytes=2 * 1024 * 1024):
    """Largest aligned row-tile whose bytes stay under target_bytes."""
    # f32 tiles are (8,128); 16-bit dtypes pack 16 rows per vreg.
    align = 8 if itemsize >= 4 else (16 if itemsize == 2 else 32)
    per_row = max(cols * itemsize, 1)
    by_budget = max(align, (target_bytes // per_row) // align * align)
    rows_aligned = _cdiv(rows, align) * align
    return int(min(by_budget, rows_aligned))


def _keypoint_loss_kernel(pred_ref, gt_ref, vis_ref, out_ref, *,
                          rows, tile_rows, tiles_per_core, n_row_blocks):
    c = pl.program_id(0)   # "parallel" core-split axis (v7x: one per TC)
    t = pl.program_id(1)   # "arbitrary" reduction axis over row tiles

    # Recompute exactly what the index_map selected (including its clamp) so
    # the row-validity mask always matches the data that was DMA'd in.
    nominal = c * tiles_per_core + t
    blk = jnp.minimum(nominal, n_row_blocks - 1)
    start = blk * tile_rows

    local_row = jax.lax.broadcasted_iota(jnp.int32, (tile_rows, 1), 0)
    owns_block = nominal == blk                        # False for clamped repeats
    valid = jnp.logical_and(owns_block, (start + local_row) < rows)

    pred = pred_ref[...].astype(jnp.float32)
    gt = gt_ref[...].astype(jnp.float32)
    vis = vis_ref[...].astype(jnp.float32)             # (tile_rows, 1)

    d = (pred - gt) * vis                              # lane-broadcast of vis
    sq = jnp.where(valid, d * d, jnp.float32(0.0))     # NaN-safe tail masking

    # Fold row-groups of 8 into a lane-dense (8, cols) partial using pure VPU
    # adds on layout-aligned static slices (no XLU cross-lane reduce per step).
    contrib = sq[0:8, :]
    for g in range(1, tile_rows // 8):
        contrib = contrib + sq[g * 8:(g + 1) * 8, :]

    @pl.when(t == 0)
    def _():
        out_ref[...] = jnp.zeros_like(out_ref)

    out_ref[...] += contrib


@functools.partial(jax.jit, static_argnames=("loss_weight", "tile_rows"))
def keypoint_loss(pred_heatmaps, gt_heatmaps, keypoint_vis=None,
                  loss_weight=1.0, tile_rows=None):
    """Pallas equivalent of KeypointLoss.forward.

    pred_heatmaps, gt_heatmaps: (B, N, H, W) float32 or bfloat16
    keypoint_vis: (B, N) or None (treated as all-ones)
    Returns scalar float32 loss.
    """
    B, N, H, W = pred_heatmaps.shape
    rows, cols = B * N, H * W

    if keypoint_vis is None:
        keypoint_vis = jnp.ones((B, N), dtype=jnp.float32)

    pred2d = pred_heatmaps.reshape(rows, cols)
    gt2d = gt_heatmaps.reshape(rows, cols)
    vis2d = keypoint_vis.reshape(rows, 1).astype(jnp.float32)

    itemsize = max(jnp.dtype(pred_heatmaps.dtype).itemsize,
                   jnp.dtype(gt_heatmaps.dtype).itemsize)
    if tile_rows is None:
        tile_rows = _pick_tile_rows(rows, cols, itemsize)
    assert tile_rows % 8 == 0, "tile_rows must be a multiple of 8"

    n_row_blocks = _cdiv(rows, tile_rows)
    num_splits = 2 if n_row_blocks >= 2 else 1     # shard across v7x's 2 TCs
    tiles_per_core = _cdiv(n_row_blocks, num_splits)
    grid = (num_splits, tiles_per_core)

    def row_block_map(c, t):
        # Clamp so every DMA window start is in-bounds; clamped repeats are
        # masked out in-kernel (owns_block == False there).
        return (jnp.minimum(c * tiles_per_core + t, n_row_blocks - 1), 0)

    # VMEM budget: 2 heatmap inputs x 2 pipeline buffers x tile, + vis + out.
    tile_bytes = tile_rows * cols * itemsize
    vis_bytes = tile_rows * 128 * 4
    out_bytes = 8 * max(cols, 128) * 4
    vmem_needed = 2 * 2 * tile_bytes + 2 * vis_bytes + 2 * out_bytes + (4 << 20)
    vmem_limit = int(min(max(vmem_needed, 32 << 20), 64 << 20))

    kernel = functools.partial(
        _keypoint_loss_kernel,
        rows=rows, tile_rows=tile_rows,
        tiles_per_core=tiles_per_core, n_row_blocks=n_row_blocks)

    partials = pl.pallas_call(
        kernel,
        out_shape=jax.ShapeDtypeStruct((num_splits * 8, cols), jnp.float32),
        grid_spec=pltpu.PrefetchScalarGridSpec(
            num_scalar_prefetch=0,
            grid=grid,
            in_specs=[
                pl.BlockSpec((tile_rows, cols), row_block_map),
                pl.BlockSpec((tile_rows, cols), row_block_map),
                pl.BlockSpec((tile_rows, 1), row_block_map),
            ],
            out_specs=pl.BlockSpec((8, cols), lambda c, t: (c, 0)),
        ),
        compiler_params=pltpu.CompilerParams(
            dimension_semantics=("parallel", "arbitrary"),
            vmem_limit_bytes=vmem_limit),
    )(pred2d, gt2d, vis2d)

    # Single cross-lane reduction + mean + loss_weight, once, in the wrapper.
    total = jnp.sum(partials)
    mean = total / jnp.float32(rows * cols)
    return mean * jnp.float32(loss_weight)


def _ref_loss(pred, gt, vis, loss_weight):
    B, N, H, W = pred.shape
    p = pred.reshape(B * N, -1).astype(jnp.float32)
    g = gt.reshape(B * N, -1).astype(jnp.float32)
    if vis is None:
        vis = jnp.ones((B, N), dtype=jnp.float32)
    v = vis.reshape(B * N, 1).astype(jnp.float32)
    return jnp.mean((v * (p - g)) ** 2) * jnp.float32(loss_weight)


if __name__ == "__main__":
    key = jax.random.PRNGKey(0)

    def make(k, B, N, H, W, dtype=jnp.float32):
        k1, k2, k3 = jax.random.split(k, 3)
        pred = jax.random.normal(k1, (B, N, H, W), dtype=jnp.float32).astype(dtype)
        gt = jax.random.normal(k2, (B, N, H, W), dtype=jnp.float32).astype(dtype)
        vis = (jax.random.uniform(k3, (B, N)) > 0.3).astype(jnp.float32)
        return pred, gt, vis

    k1, k2, k3, k4 = jax.random.split(key, 4)

    # 1) basic case (B*N = 8 rows -> single tile)
    pred, gt, vis = make(k1, 2, 4, 16, 16)
    out = keypoint_loss(pred, gt, vis, loss_weight=1.0)
    jax.block_until_ready(out)
    ref = _ref_loss(pred, gt, vis, 1.0)
    assert jnp.allclose(out, ref, rtol=1e-5, atol=1e-6), (out, ref)

    # 2) keypoint_vis=None path + loss_weight scaling
    out = keypoint_loss(pred, gt, None, loss_weight=0.5)
    jax.block_until_ready(out)
    ref = _ref_loss(pred, gt, None, 0.5)
    assert jnp.allclose(out, ref, rtol=1e-5, atol=1e-6), (out, ref)

    # 3) multi-tile accumulation + 2-way core split (rows=64, tile=16 -> grid (2,2))
    pred, gt, vis = make(k2, 4, 16, 32, 32)
    out = keypoint_loss(pred, gt, vis, loss_weight=1.0, tile_rows=16)
    jax.block_until_ready(out)
    ref = _ref_loss(pred, gt, vis, 1.0)
    assert jnp.allclose(out, ref, rtol=1e-5, atol=1e-6), (out, ref)

    # 4) rows not a multiple of the sublane quantum (B*N = 10) -> in-kernel mask
    pred, gt, vis = make(k3, 2, 5, 16, 16)
    out = keypoint_loss(pred, gt, vis, loss_weight=1.0)
    jax.block_until_ready(out)
    ref = _ref_loss(pred, gt, vis, 1.0)
    assert jnp.allclose(out, ref, rtol=1e-5, atol=1e-6), (out, ref)

    # 5) bf16 heatmaps (halves HBM traffic), f32 accumulation in-kernel
    pred, gt, vis = make(k4, 2, 8, 16, 16, dtype=jnp.bfloat16)
    out = keypoint_loss(pred, gt, vis, loss_weight=2.0)
    jax.block_until_ready(out)
    ref = _ref_loss(pred, gt, vis, 2.0)
    assert jnp.allclose(out, ref, rtol=1e-5, atol=1e-6), (out, ref)

    print("KERNEL_OK")
</pallas_src>

<mosaic_0001>
module attributes {stable_mosaic.version = 11 : i64} {
  func.func @_keypoint_loss_kernel(%arg0: i32, %arg1: i32, %arg2: memref<8x256xf32, #tpu.memory_space<vmem>>, %arg3: memref<8x256xf32, #tpu.memory_space<vmem>>, %arg4: memref<8x1xf32, #tpu.memory_space<vmem>>, %arg5: memref<8x256xf32, #tpu.memory_space<vmem>>) attributes {dimension_semantics = [#tpu.dimension_semantics<parallel>, #tpu.dimension_semantics<arbitrary>], iteration_bounds = array<i64: 1, 1>, scalar_prefetch = 0 : i64, scratch_operands = 0 : i64, tpu.core_type = #tpu.core_type<tc>, window_params = [{transform_indices = @transform_0, window_bounds = array<i64: 8, 256>}, {transform_indices = @transform_1, window_bounds = array<i64: 8, 256>}, {transform_indices = @transform_2, window_bounds = array<i64: 8, 1>}, {transform_indices = @transform_3, window_bounds = array<i64: 8, 256>}]} {
    %c1_i32 = arith.constant 1 : i32
    %0 = arith.muli %arg0, %c1_i32 : i32
    %1 = arith.addi %0, %arg1 : i32
    %c0_i32 = arith.constant 0 : i32
    %2 = arith.minsi %1, %c0_i32 : i32
    %c8_i32 = arith.constant 8 : i32
    %3 = arith.muli %2, %c8_i32 : i32
    %4 = tpu.iota {dimensions = array<i32: 0>} : vector<8x1xi32>
    %5 = arith.cmpi eq, %1, %2 : i32
    %6 = vector.broadcast %3 : i32 to vector<8x1xi32>
    %7 = arith.addi %6, %4 : vector<8x1xi32>
    %c8_i32_0 = arith.constant 8 : i32
    %8 = vector.broadcast %c8_i32_0 : i32 to vector<8x1xi32>
    %9 = arith.cmpi slt, %7, %8 : vector<8x1xi32>
    %10 = vector.broadcast %5 : i1 to vector<8x1xi1>
    %11 = arith.andi %10, %9 : vector<8x1xi1>
    %c0 = arith.constant 0 : index
    %c0_1 = arith.constant 0 : index
    %12 = vector.load %arg2[%c0, %c0_1] : memref<8x256xf32, #tpu.memory_space<vmem>>, vector<8x256xf32>
    %c0_2 = arith.constant 0 : index
    %c0_3 = arith.constant 0 : index
    %13 = vector.load %arg3[%c0_2, %c0_3] : memref<8x256xf32, #tpu.memory_space<vmem>>, vector<8x256xf32>
    %c0_4 = arith.constant 0 : index
    %c0_5 = arith.constant 0 : index
    %14 = vector.load %arg4[%c0_4, %c0_5] : memref<8x1xf32, #tpu.memory_space<vmem>>, vector<8x1xf32>
    %15 = arith.subf %12, %13 : vector<8x256xf32>
    %16 = vector.broadcast %14 : vector<8x1xf32> to vector<8x256xf32>
    %17 = arith.mulf %15, %16 : vector<8x256xf32>
    %18 = arith.mulf %17, %17 : vector<8x256xf32>
    %cst = arith.constant 0.000000e+00 : f32
    %19 = vector.shape_cast %11 : vector<8x1xi1> to vector<8x1xi1>
    %20 = vector.broadcast %19 : vector<8x1xi1> to vector<8x256xi1>
    %21 = vector.broadcast %cst : f32 to vector<8x256xf32>
    %22 = arith.select %20, %18, %21 : vector<8x256xi1>, vector<8x256xf32>
    %c0_i32_6 = arith.constant 0 : i32
    %23 = arith.cmpi eq, %arg1, %c0_i32_6 : i32
    %24 = arith.extui %23 : i1 to i32
    %c0_i32_7 = arith.constant 0 : i32
    %25 = arith.cmpi ne, %24, %c0_i32_7 : i32
    scf.if %25 {
      %cst_12 = arith.constant 0.000000e+00 : f32
      %29 = vector.broadcast %cst_12 : f32 to vector<8x256xf32>
      %c0_13 = arith.constant 0 : index
      %c0_14 = arith.constant 0 : index
      %30 = vector.load %arg5[%c0_13, %c0_14] : memref<8x256xf32, #tpu.memory_space<vmem>>, vector<8x256xf32>
      tpu.vector_store %arg5[%c0_13, %c0_14], %29 {strides = array<i32>} : memref<8x256xf32, #tpu.memory_space<vmem>>, vector<8x256xf32>,
    } else {
    }
    %c0_8 = arith.constant 0 : index
    %c0_9 = arith.constant 0 : index
    %26 = vector.load %arg5[%c0_8, %c0_9] : memref<8x256xf32, #tpu.memory_space<vmem>>, vector<8x256xf32>
    %27 = arith.addf %26, %22 : vector<8x256xf32>
    %c0_10 = arith.constant 0 : index
    %c0_11 = arith.constant 0 : index
    %28 = vector.load %arg5[%c0_10, %c0_11] : memref<8x256xf32, #tpu.memory_space<vmem>>, vector<8x256xf32>
    tpu.vector_store %arg5[%c0_10, %c0_11], %27 {strides = array<i32>} : memref<8x256xf32, #tpu.memory_space<vmem>>, vector<8x256xf32>,
    return
  }
  func.func @transform_0(%arg0: i32, %arg1: i32) -> (i32, i32) {
    %c1_i32 = arith.constant 1 : i32
    %0 = arith.muli %arg0, %c1_i32 : i32
    %1 = arith.addi %0, %arg1 : i32
    %c0_i32 = arith.constant 0 : i32
    %2 = arith.minsi %1, %c0_i32 : i32
    %c0_i32_0 = arith.constant 0 : i32
    %c0_i32_1 = arith.constant 0 : i32
    return %2, %c0_i32_0 : i32, i32
  }
  func.func @transform_1(%arg0: i32, %arg1: i32) -> (i32, i32) {
    %c1_i32 = arith.constant 1 : i32
    %0 = arith.muli %arg0, %c1_i32 : i32
    %1 = arith.addi %0, %arg1 : i32
    %c0_i32 = arith.constant 0 : i32
    %2 = arith.minsi %1, %c0_i32 : i32
    %c0_i32_0 = arith.constant 0 : i32
    %c0_i32_1 = arith.constant 0 : i32
    return %2, %c0_i32_0 : i32, i32
  }
  func.func @transform_2(%arg0: i32, %arg1: i32) -> (i32, i32) {
    %c1_i32 = arith.constant 1 : i32
    %0 = arith.muli %arg0, %c1_i32 : i32
    %1 = arith.addi %0, %arg1 : i32
    %c0_i32 = arith.constant 0 : i32
    %2 = arith.minsi %1, %c0_i32 : i32
    %c0_i32_0 = arith.constant 0 : i32
    %c0_i32_1 = arith.constant 0 : i32
    return %2, %c0_i32_0 : i32, i32
  }
  func.func @transform_3(%arg0: i32, %arg1: i32) -> (i32, i32) {
    %c0_i32 = arith.constant 0 : i32
    %c0_i32_0 = arith.constant 0 : i32
    return %arg0, %c0_i32 : i32, i32
  }
}

</mosaic_0001>

<llo_original>
// kernel: keypoint_loss.1
$region0: #{keypoint_loss.1}
  #allocation0 [shape = 'u32[]', space=smem, size = 0x4, offset = 0x4, fixed_abs, tag = 'smem constant byte address 0x4 - core index']
  #allocation1 [shape = 'u32[72,128]{1,0:T(1,128)}', space=vmem, size = 0x9000, scoped, tag = 'internal scratch']
  %s0 = inlined_call_operand.vmem [shape: f32[8,256], index: 0, kind: input, shape index: {}]
  %s1 = inlined_call_operand.vmem [shape: f32[8,256], index: 1, kind: input, shape index: {}]
  %s2 = inlined_call_operand.vmem [shape: f32[8,1], index: 2, kind: input, shape index: {}]
  %s3 = inlined_call_operand.vmem [shape: f32[8,256], index: 3, kind: output, shape index: {}]
  %s4 = sld [smem:[#allocation0]]
  $region26: #{keypoint_loss.1} parent=0
    _
  %s6 = ssub.s32 1, %s4
  %s7 = scalar_select 0, %s6, %s4
  // Predicated region
  $region2: #{keypoint_loss.1} parent=0 // pred_check
    _
  $region3: #{keypoint_loss.1} parent=0 // pred_check_branch
    %9 = sbr.rel (0) target = $region5
  $region4: #{keypoint_loss.1} parent=0 // pred_region
    %s10 = sadd.s32 0, 0
    %p11 = scmp.lt.s32.totalorder %s10, 0
    %s12 = scalar_select %p11, %s10, 0
    %p13 = scmp.lt.s32.totalorder %s12, 0
    %s14 = scalar_select %p13, %s12, 0
    %s15 = smul.addr %s14, 2
    %s16 = smul.addr %s15, 8
    %s17 = scalar_lea.vmem %s0, %s16
    %s18 = sadd.s32 0, 0
    %p19 = scmp.lt.s32.totalorder %s18, 0
    %s20 = scalar_select %p19, %s18, 0
  $region5: #{keypoint_loss.1} parent=0 // pred_fallthru
    _
  // Predicated region
  $region6: #{keypoint_loss.1} parent=0 // pred_check
    _
  $region7: #{keypoint_loss.1} parent=0 // pred_check_branch
    %22 = sbr.rel (0) target = $region9
  $region8: #{keypoint_loss.1} parent=0 // pred_region
    %s23 = sadd.s32 0, 0
    %p24 = scmp.lt.s32.totalorder %s23, 0
    %s25 = scalar_select %p24, %s23, 0
    %p26 = scmp.lt.s32.totalorder %s25, 0
    %s27 = scalar_select %p26, %s25, 0
    %s28 = smul.addr %s27, 2
    %s29 = smul.addr %s28, 8
    %s30 = scalar_lea.vmem %s1, %s29
    %s31 = sadd.s32 0, 0
    %p32 = scmp.lt.s32.totalorder %s31, 0
    %s33 = scalar_select %p32, %s31, 0
  $region9: #{keypoint_loss.1} parent=0 // pred_fallthru
    _
  // Predicated region
  $region10: #{keypoint_loss.1} parent=0 // pred_check
    _
  $region11: #{keypoint_loss.1} parent=0 // pred_check_branch
    %35 = sbr.rel (0) target = $region13
  $region12: #{keypoint_loss.1} parent=0 // pred_region
    %s36 = sadd.s32 0, 0
    %p37 = scmp.lt.s32.totalorder %s36, 0
    %s38 = scalar_select %p37, %s36, 0
    %p39 = scmp.lt.s32.totalorder %s38, 0
    %s40 = scalar_select %p39, %s38, 0
    %s41 = smul.addr %s40, 8
    %s42 = scalar_lea.vmem %s2, %s41
    %s43 = sadd.s32 0, 0
    %p44 = scmp.lt.s32.totalorder %s43, 0
    %s45 = scalar_select %p44, %s43, 0
  $region13: #{keypoint_loss.1} parent=0 // pred_fallthru
    _
  %s46 = sadd.s32 0, 0
  %p47 = scmp.lt.s32.totalorder %s46, 0
  %s48 = scalar_select %p47, %s46, 0
  %p49 = scmp.lt.s32.totalorder %s48, 0
  %s50 = scalar_select %p49, %s48, 0
  %s51 = smul.addr %s50, 2
  %s52 = smul.addr %s51, 8
  %s53 = scalar_lea.vmem %s0, %s52
  %s54 = sadd.s32 0, 0
  %p55 = scmp.lt.s32.totalorder %s54, 0
  %s56 = scalar_select %p55, %s54, 0
  %p57 = scmp.lt.s32.totalorder %s56, 0
  %s58 = scalar_select %p57, %s56, 0
  %s59 = smul.addr %s58, 2
  %s60 = smul.addr %s59, 8
  %s61 = scalar_lea.vmem %s1, %s60
  %s62 = sadd.s32 0, 0
  %p63 = scmp.lt.s32.totalorder %s62, 0
  %s64 = scalar_select %p63, %s62, 0
  %p65 = scmp.lt.s32.totalorder %s64, 0
  %s66 = scalar_select %p65, %s64, 0
  %s67 = smul.addr %s66, 8
  %s68 = scalar_lea.vmem %s2, %s67
  %s69 = sadd.s32 0, 0
  %p70 = scmp.lt.s32.totalorder %s69, 0
  %s71 = scalar_select %p70, %s69, 0
  %p72 = scmp.lt.s32.totalorder %s71, 0
  %s73 = scalar_select %p72, %s71, 0
  %s74 = smul.addr %s73, 2
  %s75 = smul.addr %s74, 8
  %s76 = scalar_lea.vmem %s0, %s75
  %s77 = sadd.s32 0, 0
  %p78 = scmp.lt.s32.totalorder %s77, 0
  %s79 = scalar_select %p78, %s77, 0
  %s80 = sadd.s32 0, 0
  %p81 = scmp.lt.s32.totalorder %s80, 0
  %s82 = scalar_select %p81, %s80, 0
  %p83 = scmp.lt.s32.totalorder %s82, 0
  %s84 = scalar_select %p83, %s82, 0
  %s85 = smul.addr %s84, 2
  %s86 = smul.addr %s85, 8
  %s87 = scalar_lea.vmem %s1, %s86
  %s88 = sadd.s32 0, 0
  %p89 = scmp.lt.s32.totalorder %s88, 0
  %s90 = scalar_select %p89, %s88, 0
  %s91 = sadd.s32 0, 0
  %p92 = scmp.lt.s32.totalorder %s91, 0
  %s93 = scalar_select %p92, %s91, 0
  %p94 = scmp.lt.s32.totalorder %s93, 0
  %s95 = scalar_select %p94, %s93, 0
  %s96 = smul.addr %s95, 8
  %s97 = scalar_lea.vmem %s2, %s96
  %s98 = sadd.s32 0, 0
  %p99 = scmp.lt.s32.totalorder %s98, 0
  %s100 = scalar_select %p99, %s98, 0
  %s101 = sadd.s32 0, 0
  %p102 = scmp.lt.s32.totalorder %s101, 0
  %s103 = scalar_select %p102, %s101, 0
  %s104 = smul.u32 %s103, 8
  %v105 = vlaneseq
  %v106 = vshrl.u32 %v105, 7
  %p107 = scmp.eq.s32.totalorder %s101, %s103
  %v108 = vstv %s104
  %v109 = vadd.s32 %v108, %v106
  %vm110 = vcmp.lt.s32.totalorder %v109, 8
  %s111 = scalar_select %p107, 1, 0
  %v112 = vstv %s111
  %vm113 = vcmp.eq.s32.totalorder %v112, 1
  %vm114 = vmand %vm113, %vm110
  %v115 = vld [vmem:[%s76] sm:$0xff]
  %v116 = vld [vmem:[%s76 + $0x8] sm:$0xff]
  %v117 = vld [vmem:[%s87] sm:$0xff]
  %v118 = vld [vmem:[%s87 + $0x8] sm:$0xff]
  %v119 = vld [vmem:[%s97] sm:$0xff]
  %v120 = vsub.f32 %v115, %v117
  %v121 = vsub.f32 %v116, %v118
  %123 = vset.pattern.permute.xlu0 0
  %124 = vperm.xlu0 %123, %v119
  %v125 = vpop.permute.xlu0 %124
  %v127 = vmul.f32 %v120, %v125
  %v128 = vmul.f32 %v121, %v125
  %v129 = vmul.f32 %v127, %v127
  %v130 = vmul.f32 %v128, %v128
  %v131 = vsel %vm114, 1, 0
  %vm132 = vcmp.eq.s32.totalorder %v131, 1
  %v133 = vsel %vm132, %v129, 0.0
  %v134 = vsel %vm132, %v130, 0.0
  %p135 = scmp.eq.s32.totalorder 0, 0
  // Predicated region
  $region14: #{keypoint_loss.1} parent=0 // pred_check
    %p136 = pneg %p135
  $region15: #{keypoint_loss.1} parent=0 // pred_check_branch
    %138 = sbr.rel (%p136) target = $region17
  $region16: #{keypoint_loss.1} parent=0 // pred_region
    %139 = vst [vmem:[%s3] sm:$0xff] 0.0
    %140 = vst [vmem:[%s3 + $0x8] sm:$0xff] 0.0
  $region17: #{keypoint_loss.1} parent=0 // pred_fallthru
    _
  %v141 = vld [vmem:[%s3] sm:$0xff]
  %v142 = vld [vmem:[%s3 + $0x8] sm:$0xff]
  %v143 = vadd.f32 %v141, %v133
  %v144 = vadd.f32 %v142, %v134
  %145 = vst [vmem:[%s3] sm:$0xff] %v143
  %146 = vst [vmem:[%s3 + $0x8] sm:$0xff] %v144
  // Predicated region
  $region18: #{keypoint_loss.1} parent=0 // pred_check
    _
  $region19: #{keypoint_loss.1} parent=0 // pred_check_branch
    %148 = sbr.rel (0) target = $region21
  $region20: #{keypoint_loss.1} parent=0 // pred_region
    _
  $region21: #{keypoint_loss.1} parent=0 // pred_fallthru
    _
  // Predicated region
  $region22: #{keypoint_loss.1} parent=0 // pred_check
    _
  $region23: #{keypoint_loss.1} parent=0 // pred_check_branch
    %150 = sbr.rel (0) target = $region25
  $region24: #{keypoint_loss.1} parent=0 // pred_region
    _
  $region25: #{keypoint_loss.1} parent=0 // pred_fallthru
    _

</llo_original>
